<compile_context>
chip_gen: v5e
topology: v5e:2x2
jax: 0.10.0
libtpu: 0.0.40
codegen_flags: <defaults>
</compile_context>

<pallas_src>
import numpy as np
import jax
import jax.numpy as jnp
from jax.experimental import pallas as pl
from jax.experimental.pallas import tpu as pltpu


def _round_up(x, m):
    return ((x + m - 1) // m) * m


def _stft_kernel(x_ref, basis_ref, out_ref, acc_ref):
    """x_ref:     (1, Q, hop, T_tile)  bf16 per-hop-phase, lane-aligned slabs
       basis_ref: (Q, 2*C_pad, hop)    bf16 fused real/imag windowed DFT basis
       out_ref:   (1, C_pad, T_tile)   f32 magnitude (lane-dense in T)
       acc_ref:   (2, 2*C_pad, T_sub)  f32 ping-pong MXU accumulator scratch"""
    q_taps, two_c_pad, _hop = basis_ref.shape
    c_pad = two_c_pad // 2
    t_tile = out_ref.shape[-1]
    t_sub = acc_ref.shape[-1]
    n_sub = t_tile // t_sub

    # Static, fully-unrolled loops (LLO scheduler visibility).  Sub-tiling the
    # frame axis lets sub-tile s's sqrt epilogue overlap sub-tile s+1's
    # vmatmuls; the ping-pong accumulator removes the WAR hazard between them.
    for s in range(n_sub):
        slot = s % 2
        lo = s * t_sub                                     # multiple of 128
        for q in range(q_taps):                            # hop phases (Q = ceil(L/hop))
            slab = x_ref[0, q, :, lo:lo + t_sub]           # (hop, T_sub), lane-aligned
            prod = jnp.dot(basis_ref[q], slab,             # MXU, f32 accumulate
                           preferred_element_type=jnp.float32)
            if q == 0:
                acc_ref[slot] = prod
            else:
                acc_ref[slot] += prod
        re = acc_ref[slot, :c_pad, :]                      # sublane-aligned split
        im = acc_ref[slot, c_pad:, :]
        out_ref[0, :, lo:lo + t_sub] = jnp.sqrt(re * re + im * im)


def make_basis_stack(filter_length, hop_length, win_length):
    """Fused (real stacked over imag), zero-padded, per-hop-phase-split basis.

    Returns (basis_stack (Q, 2*C_pad, hop) bf16, c_pad, Q)."""
    cutoff = filter_length // 2 + 1
    fb = np.fft.fft(np.eye(filter_length))
    fb = np.vstack([np.real(fb[:cutoff, :]),
                    np.imag(fb[:cutoff, :])]).astype(np.float32)   # (2*cutoff, L)
    # torch.hann_window(win_length) is periodic: 0.5*(1 - cos(2*pi*n/N)).
    # The module's broadcast (basis * window) requires win_length == filter_length.
    assert win_length == filter_length, "STFT module requires win_length == filter_length"
    n = np.arange(win_length, dtype=np.float32)
    hann = 0.5 - 0.5 * np.cos(2.0 * np.pi * n / win_length)
    fb = fb * hann[None, :]

    c_pad = _round_up(cutoff, 8)                        # sublane-aligned re/im split
    Q = -(-filter_length // hop_length)                 # ceil(L / hop)
    l_taps = Q * hop_length
    fused = np.zeros((2 * c_pad, l_taps), np.float32)
    fused[:cutoff, :filter_length] = fb[:cutoff]
    fused[c_pad:c_pad + cutoff, :filter_length] = fb[cutoff:]
    # Split taps by hop phase: stack[q, c, r] = fused[c, q*hop + r].
    stack = fused.reshape(2 * c_pad, Q, hop_length).transpose(1, 0, 2)
    # bf16 feeds the MXU at full rate on all generations; dots accumulate in f32.
    return jnp.asarray(stack, dtype=jnp.bfloat16), c_pad, Q


def _pick_t_tile(T, max_t_tile):
    """Multiple-of-128 frame tile balancing last-tile waste vs. per-step cost."""
    OVERHEAD_FRAMES = 256   # ~0.35us grid-step overhead in bf16 frame-equivalents
    cap = max(128, min(_round_up(max_t_tile, 128), _round_up(T, 128)))
    best_tt, best_cost = 128, None
    for tt in range(128, cap + 1, 128):
        steps = -(-T // tt)
        cost = steps * (tt + OVERHEAD_FRAMES)
        if best_cost is None or cost < best_cost or (cost == best_cost and tt > best_tt):
            best_tt, best_cost = tt, cost
    return best_tt


def stft_forward(x, filter_length=16, hop_length=4, win_length=16, max_t_tile=512):
    """x: (B, num_samples) f32 -> magnitude (B, cutoff, num_frames) f32."""
    B, num_samples = x.shape
    pad = filter_length // 2
    assert num_samples > pad, "reflect padding needs num_samples > filter_length//2"
    cutoff = filter_length // 2 + 1

    basis_stack, c_pad, Q = make_basis_stack(filter_length, hop_length, win_length)
    two_c_pad = 2 * c_pad

    # Reflect pad (matches F.pad mode='reflect'); frame count as in conv1d.
    x_pad = jnp.pad(x, ((0, 0), (pad, pad)), mode="reflect")      # (B, S + 2*pad)
    padded_len = num_samples + 2 * pad
    T = (padded_len - filter_length) // hop_length + 1

    # Frame-axis tile on lanes.  Multiple of 128 (unmasked stores, v5e MXU).
    t_tile = _pick_t_tile(T, max_t_tile)
    n_tiles = pl.cdiv(T, t_tile)
    n_frames_pad = n_tiles * t_tile
    k = t_tile // 128
    n_sub = max(d for d in (1, 2, 3, 4) if k % d == 0)            # 128-frame sub-tiles
    t_sub = t_tile // n_sub

    # Hop-phase de-interleave (input-sized): x_deint[b, r, c] = x_ext[b, c*hop + r]
    n_cols = n_frames_pad + Q - 1
    total = n_cols * hop_length
    if total >= padded_len:
        x_ext = jnp.pad(x_pad, ((0, 0), (0, total - padded_len)))
    else:
        x_ext = x_pad[:, :total]             # trailing samples unused by any frame
    x_deint = x_ext.reshape(B, n_cols, hop_length).transpose(0, 2, 1)   # (B, hop, n_cols)
    x_deint = x_deint.astype(jnp.bfloat16)
    # One lane-aligned shifted copy per hop phase (Q ~ 4x the input in bytes, but
    # the kernel is compute-bound, so the extra HBM read is fully overlapped):
    #   x_phases[b, q, r, m] = x_pad[b, (m + q)*hop + r]
    x_phases = jnp.stack([x_deint[:, :, q:q + n_frames_pad] for q in range(Q)], axis=1)

    out = pl.pallas_call(
        _stft_kernel,
        out_shape=jax.ShapeDtypeStruct((B, c_pad, n_frames_pad), jnp.float32),
        grid=(B, n_tiles),
        in_specs=[
            # one frame-tile of per-phase slabs per grid step (auto double-buffered)
            pl.BlockSpec((1, Q, hop_length, t_tile), lambda b, j: (b, 0, 0, j)),
            # fused basis, resident (constant index_map -> no per-step re-DMA)
            pl.BlockSpec((Q, two_c_pad, hop_length), lambda b, j: (0, 0, 0)),
        ],
        # lane-dense output tile; (B, C_pad, T_pad) is already NCW layout
        out_specs=pl.BlockSpec((1, c_pad, t_tile), lambda b, j: (b, 0, j)),
        scratch_shapes=[pltpu.VMEM((2, two_c_pad, t_sub), jnp.float32)],
        compiler_params=pltpu.CompilerParams(
            dimension_semantics=("parallel", "parallel")),
    )(x_phases, basis_stack)

    # Drop padded channels / padded frames (garbage lanes, not zeros) -> (B, cutoff, T).
    return out[:, :cutoff, :T]


def _reference(x, filter_length=16, hop_length=4, win_length=16):
    """Pure-JAX f32 reference for the same math (sanity check)."""
    B, num_samples = x.shape
    pad = filter_length // 2
    cutoff = filter_length // 2 + 1
    fb = np.fft.fft(np.eye(filter_length))
    fb = np.vstack([np.real(fb[:cutoff, :]),
                    np.imag(fb[:cutoff, :])]).astype(np.float32)
    n = np.arange(win_length, dtype=np.float32)
    hann = 0.5 - 0.5 * np.cos(2.0 * np.pi * n / win_length)
    fb = jnp.asarray(fb * hann[None, :])                 # (2*cutoff, L)
    x_pad = jnp.pad(x, ((0, 0), (pad, pad)), mode="reflect")
    T = (num_samples + 2 * pad - filter_length) // hop_length + 1
    idx = jnp.arange(T)[:, None] * hop_length + jnp.arange(filter_length)[None, :]
    frames = x_pad[:, idx]                               # (B, T, L)
    ft = jnp.einsum("btl,cl->bct", frames, fb)           # (B, 2*cutoff, T)
    re, im = ft[:, :cutoff, :], ft[:, cutoff:, :]
    return jnp.sqrt(re * re + im * im)


if __name__ == "__main__":
    # Small shapes consistent with the module (scaled-down STFT params).
    B, num_samples = 2, 64
    filter_length, hop_length, win_length = 16, 4, 16

    key = jax.random.PRNGKey(0)
    x = jax.random.normal(key, (B, num_samples), dtype=jnp.float32)

    stft = jax.jit(lambda inp: stft_forward(inp, filter_length, hop_length, win_length))
    mag = jax.block_until_ready(stft(x))

    ref = _reference(x, filter_length, hop_length, win_length)
    assert mag.shape == (B, filter_length // 2 + 1,
                         num_samples // hop_length + 1), mag.shape
    # bf16 kernel inputs vs. f32 reference -> relaxed tolerance (perf review note).
    np.testing.assert_allclose(np.asarray(mag), np.asarray(ref),
                               rtol=5e-2, atol=5e-2)
    print("KERNEL_OK")
</pallas_src>

<mosaic_0001>
module attributes {stable_mosaic.version = 11 : i64} {
  func.func @_stft_kernel(%arg0: i32, %arg1: i32, %arg2: memref<1x4x4x128xbf16, #tpu.memory_space<vmem>>, %arg3: memref<4x32x4xbf16, #tpu.memory_space<vmem>>, %arg4: memref<1x16x128xf32, #tpu.memory_space<vmem>>, %arg5: memref<2x32x128xf32, #tpu.memory_space<vmem>>) attributes {dimension_semantics = [#tpu.dimension_semantics<parallel>, #tpu.dimension_semantics<parallel>], iteration_bounds = array<i64: 2, 1>, scalar_prefetch = 0 : i64, scratch_operands = 1 : i64, tpu.core_type = #tpu.core_type<tc>, window_params = [{transform_indices = @transform_0, window_bounds = array<i64: 1, 4, 4, 128>}, {pipeline_mode = #tpu.pipeline_mode<synchronous>, transform_indices = @transform_1, window_bounds = array<i64: 4, 32, 4>}, {transform_indices = @transform_2, window_bounds = array<i64: 1, 16, 128>}]} {
    %c0 = arith.constant 0 : index
    %c0_0 = arith.constant 0 : index
    %c0_1 = arith.constant 0 : index
    %c0_2 = arith.constant 0 : index
    %0 = vector.load %arg2[%c0, %c0_0, %c0_1, %c0_2] : memref<1x4x4x128xbf16, #tpu.memory_space<vmem>>, vector<1x1x4x128xbf16>
    %1 = vector.shape_cast %0 : vector<1x1x4x128xbf16> to vector<4x128xbf16>
    %c0_3 = arith.constant 0 : index
    %c0_4 = arith.constant 0 : index
    %c0_5 = arith.constant 0 : index
    %2 = vector.load %arg3[%c0_3, %c0_4, %c0_5] : memref<4x32x4xbf16, #tpu.memory_space<vmem>>, vector<1x32x4xbf16>
    %3 = vector.shape_cast %2 : vector<1x32x4xbf16> to vector<32x4xbf16>
    %cst = arith.constant dense<0.000000e+00> : vector<32x128xf32>
    %4 = tpu.matmul %3, %1, %cst {dimension_numbers = #tpu.dot_dimension_numbers<[1], [0], [0], [1], [0, 0, 1, 1], [], []>} : vector<32x4xbf16>, vector<4x128xbf16>, vector<32x128xf32> -> vector<32x128xf32>
    %c0_6 = arith.constant 0 : index
    %c0_7 = arith.constant 0 : index
    %c0_8 = arith.constant 0 : index
    %5 = vector.load %arg5[%c0_6, %c0_7, %c0_8] : memref<2x32x128xf32, #tpu.memory_space<vmem>>, vector<1x32x128xf32>
    %6 = vector.shape_cast %5 : vector<1x32x128xf32> to vector<32x128xf32>
    %7 = vector.shape_cast %4 : vector<32x128xf32> to vector<1x32x128xf32>
    tpu.vector_store %arg5[%c0_6, %c0_7, %c0_8], %7 {strides = array<i32>} : memref<2x32x128xf32, #tpu.memory_space<vmem>>, vector<1x32x128xf32>,
    %c0_9 = arith.constant 0 : index
    %c1 = arith.constant 1 : index
    %c0_10 = arith.constant 0 : index
    %c0_11 = arith.constant 0 : index
    %8 = vector.load %arg2[%c0_9, %c1, %c0_10, %c0_11] : memref<1x4x4x128xbf16, #tpu.memory_space<vmem>>, vector<1x1x4x128xbf16>
    %9 = vector.shape_cast %8 : vector<1x1x4x128xbf16> to vector<4x128xbf16>
    %c1_12 = arith.constant 1 : index
    %c0_13 = arith.constant 0 : index
    %c0_14 = arith.constant 0 : index
    %10 = vector.load %arg3[%c1_12, %c0_13, %c0_14] : memref<4x32x4xbf16, #tpu.memory_space<vmem>>, vector<1x32x4xbf16>
    %11 = vector.shape_cast %10 : vector<1x32x4xbf16> to vector<32x4xbf16>
    %cst_15 = arith.constant dense<0.000000e+00> : vector<32x128xf32>
    %12 = tpu.matmul %11, %9, %cst_15 {dimension_numbers = #tpu.dot_dimension_numbers<[1], [0], [0], [1], [0, 0, 1, 1], [], []>} : vector<32x4xbf16>, vector<4x128xbf16>, vector<32x128xf32> -> vector<32x128xf32>
    %c0_16 = arith.constant 0 : index
    %c0_17 = arith.constant 0 : index
    %c0_18 = arith.constant 0 : index
    %13 = vector.load %arg5[%c0_16, %c0_17, %c0_18] : memref<2x32x128xf32, #tpu.memory_space<vmem>>, vector<1x32x128xf32>
    %14 = vector.shape_cast %13 : vector<1x32x128xf32> to vector<32x128xf32>
    %15 = arith.addf %14, %12 : vector<32x128xf32>
    %c0_19 = arith.constant 0 : index
    %c0_20 = arith.constant 0 : index
    %c0_21 = arith.constant 0 : index
    %16 = vector.load %arg5[%c0_19, %c0_20, %c0_21] : memref<2x32x128xf32, #tpu.memory_space<vmem>>, vector<1x32x128xf32>
    %17 = vector.shape_cast %16 : vector<1x32x128xf32> to vector<32x128xf32>
    %18 = vector.shape_cast %15 : vector<32x128xf32> to vector<1x32x128xf32>
    tpu.vector_store %arg5[%c0_19, %c0_20, %c0_21], %18 {strides = array<i32>} : memref<2x32x128xf32, #tpu.memory_space<vmem>>, vector<1x32x128xf32>,
    %c0_22 = arith.constant 0 : index
    %c2 = arith.constant 2 : index
    %c0_23 = arith.constant 0 : index
    %c0_24 = arith.constant 0 : index
    %19 = vector.load %arg2[%c0_22, %c2, %c0_23, %c0_24] : memref<1x4x4x128xbf16, #tpu.memory_space<vmem>>, vector<1x1x4x128xbf16>
    %20 = vector.shape_cast %19 : vector<1x1x4x128xbf16> to vector<4x128xbf16>
    %c2_25 = arith.constant 2 : index
    %c0_26 = arith.constant 0 : index
    %c0_27 = arith.constant 0 : index
    %21 = vector.load %arg3[%c2_25, %c0_26, %c0_27] : memref<4x32x4xbf16, #tpu.memory_space<vmem>>, vector<1x32x4xbf16>
    %22 = vector.shape_cast %21 : vector<1x32x4xbf16> to vector<32x4xbf16>
    %cst_28 = arith.constant dense<0.000000e+00> : vector<32x128xf32>
    %23 = tpu.matmul %22, %20, %cst_28 {dimension_numbers = #tpu.dot_dimension_numbers<[1], [0], [0], [1], [0, 0, 1, 1], [], []>} : vector<32x4xbf16>, vector<4x128xbf16>, vector<32x128xf32> -> vector<32x128xf32>
    %c0_29 = arith.constant 0 : index
    %c0_30 = arith.constant 0 : index
    %c0_31 = arith.constant 0 : index
    %24 = vector.load %arg5[%c0_29, %c0_30, %c0_31] : memref<2x32x128xf32, #tpu.memory_space<vmem>>, vector<1x32x128xf32>
    %25 = vector.shape_cast %24 : vector<1x32x128xf32> to vector<32x128xf32>
    %26 = arith.addf %25, %23 : vector<32x128xf32>
    %c0_32 = arith.constant 0 : index
    %c0_33 = arith.constant 0 : index
    %c0_34 = arith.constant 0 : index
    %27 = vector.load %arg5[%c0_32, %c0_33, %c0_34] : memref<2x32x128xf32, #tpu.memory_space<vmem>>, vector<1x32x128xf32>
    %28 = vector.shape_cast %27 : vector<1x32x128xf32> to vector<32x128xf32>
    %29 = vector.shape_cast %26 : vector<32x128xf32> to vector<1x32x128xf32>
    tpu.vector_store %arg5[%c0_32, %c0_33, %c0_34], %29 {strides = array<i32>} : memref<2x32x128xf32, #tpu.memory_space<vmem>>, vector<1x32x128xf32>,
    %c0_35 = arith.constant 0 : index
    %c3 = arith.constant 3 : index
    %c0_36 = arith.constant 0 : index
    %c0_37 = arith.constant 0 : index
    %30 = vector.load %arg2[%c0_35, %c3, %c0_36, %c0_37] : memref<1x4x4x128xbf16, #tpu.memory_space<vmem>>, vector<1x1x4x128xbf16>
    %31 = vector.shape_cast %30 : vector<1x1x4x128xbf16> to vector<4x128xbf16>
    %c3_38 = arith.constant 3 : index
    %c0_39 = arith.constant 0 : index
    %c0_40 = arith.constant 0 : index
    %32 = vector.load %arg3[%c3_38, %c0_39, %c0_40] : memref<4x32x4xbf16, #tpu.memory_space<vmem>>, vector<1x32x4xbf16>
    %33 = vector.shape_cast %32 : vector<1x32x4xbf16> to vector<32x4xbf16>
    %cst_41 = arith.constant dense<0.000000e+00> : vector<32x128xf32>
    %34 = tpu.matmul %33, %31, %cst_41 {dimension_numbers = #tpu.dot_dimension_numbers<[1], [0], [0], [1], [0, 0, 1, 1], [], []>} : vector<32x4xbf16>, vector<4x128xbf16>, vector<32x128xf32> -> vector<32x128xf32>
    %c0_42 = arith.constant 0 : index
    %c0_43 = arith.constant 0 : index
    %c0_44 = arith.constant 0 : index
    %35 = vector.load %arg5[%c0_42, %c0_43, %c0_44] : memref<2x32x128xf32, #tpu.memory_space<vmem>>, vector<1x32x128xf32>
    %36 = vector.shape_cast %35 : vector<1x32x128xf32> to vector<32x128xf32>
    %37 = arith.addf %36, %34 : vector<32x128xf32>
    %c0_45 = arith.constant 0 : index
    %c0_46 = arith.constant 0 : index
    %c0_47 = arith.constant 0 : index
    %38 = vector.load %arg5[%c0_45, %c0_46, %c0_47] : memref<2x32x128xf32, #tpu.memory_space<vmem>>, vector<1x32x128xf32>
    %39 = vector.shape_cast %38 : vector<1x32x128xf32> to vector<32x128xf32>
    %40 = vector.shape_cast %37 : vector<32x128xf32> to vector<1x32x128xf32>
    tpu.vector_store %arg5[%c0_45, %c0_46, %c0_47], %40 {strides = array<i32>} : memref<2x32x128xf32, #tpu.memory_space<vmem>>, vector<1x32x128xf32>,
    %c0_48 = arith.constant 0 : index
    %c0_49 = arith.constant 0 : index
    %c0_50 = arith.constant 0 : index
    %41 = vector.load %arg5[%c0_48, %c0_49, %c0_50] : memref<2x32x128xf32, #tpu.memory_space<vmem>>, vector<1x16x128xf32>
    %42 = vector.shape_cast %41 : vector<1x16x128xf32> to vector<16x128xf32>
    %c0_51 = arith.constant 0 : index
    %c16 = arith.constant 16 : index
    %c0_52 = arith.constant 0 : index
    %43 = vector.load %arg5[%c0_51, %c16, %c0_52] : memref<2x32x128xf32, #tpu.memory_space<vmem>>, vector<1x16x128xf32>
    %44 = vector.shape_cast %43 : vector<1x16x128xf32> to vector<16x128xf32>
    %45 = arith.mulf %42, %42 : vector<16x128xf32>
    %46 = arith.mulf %44, %44 : vector<16x128xf32>
    %47 = arith.addf %45, %46 : vector<16x128xf32>
    %48 = math.sqrt %47 : vector<16x128xf32>
    %c0_53 = arith.constant 0 : index
    %c0_54 = arith.constant 0 : index
    %c0_55 = arith.constant 0 : index
    %49 = vector.load %arg4[%c0_53, %c0_54, %c0_55] : memref<1x16x128xf32, #tpu.memory_space<vmem>>, vector<1x16x128xf32>
    %50 = vector.shape_cast %49 : vector<1x16x128xf32> to vector<16x128xf32>
    %51 = vector.shape_cast %48 : vector<16x128xf32> to vector<1x16x128xf32>
    tpu.vector_store %arg4[%c0_53, %c0_54, %c0_55], %51 {strides = array<i32>} : memref<1x16x128xf32, #tpu.memory_space<vmem>>, vector<1x16x128xf32>,
    return
  }
  func.func @transform_0(%arg0: i32, %arg1: i32) -> (i32, i32, i32, i32) {
    %c0_i32 = arith.constant 0 : i32
    %c0_i32_0 = arith.constant 0 : i32
    %c0_i32_1 = arith.constant 0 : i32
    return %arg0, %c0_i32, %c0_i32_0, %arg1 : i32, i32, i32, i32
  }
  func.func @transform_1(%arg0: i32, %arg1: i32) -> (i32, i32, i32) {
    %c0_i32 = arith.constant 0 : i32
    %c0_i32_0 = arith.constant 0 : i32
    %c0_i32_1 = arith.constant 0 : i32
    %c0_i32_2 = arith.constant 0 : i32
    return %c0_i32, %c0_i32_0, %c0_i32_1 : i32, i32, i32
  }
  func.func @transform_2(%arg0: i32, %arg1: i32) -> (i32, i32, i32) {
    %c0_i32 = arith.constant 0 : i32
    %c0_i32_0 = arith.constant 0 : i32
    return %arg0, %c0_i32, %arg1 : i32, i32, i32
  }
}

</mosaic_0001>

<llo_original>
// kernel: _lambda_.1
$region0: #{_lambda_.1}
  #allocation0 [shape = 'u32[]', space=smem, size = 0x4, offset = 0x4, fixed_abs, tag = 'smem constant byte address 0x4 - core index']
  #allocation1 [shape = 'u32[72,128]{1,0:T(1,128)}', space=vmem, size = 0x9000, scoped, tag = 'internal scratch']
  #allocation2 [shape = 'f32[2,32,128]{2,1,0:T(8,128)}', space=vmem, size = 0x8000, scoped, tag = 'scratch operand']
  %s0 = inlined_call_operand.vmem [shape: bf16[2,4,4,128], index: 0, kind: input, shape index: {}]
  %s1 = inlined_call_operand.vmem [shape: bf16[4,32,4], index: 1, kind: input, shape index: {}]
  %s2 = inlined_call_operand.vmem [shape: f32[2,16,128], index: 2, kind: output, shape index: {}]
  %s3 = sld [smem:[#allocation0]]
  $region41: #{_lambda_.1} parent=0
    _
  %s5 = ssub.s32 1, %s3
  %s6 = scalar_select 0, %s5, %s3
  loop: start=0, step=1, limit=4
  $region2: #{_lambda_.1} parent=0 // loop_pre_header
    _
  $region3: #{_lambda_.1} parent=0 // loop_header
    %s8 = sphi 0, %s12
    %p9 = scmp.ge.s32.totalorder %s8, 4
    %s15 = sphi 0, %s27
    %s16 = sphi 0, %s23
    %s17 = sphi 0, %s15
    %s18 = sphi 0, %s16
    %s19 = sphi 0, %s17
    %s20 = sphi 0, %s18
    %s32 = sphi 0, %s34
    %s35 = sphi 0, %s32
    %s36 = sphi 0, %s35
    %s52 = sphi 0, %s36
    %s56 = sphi 0, %s56
    %s58 = sphi 0, %s56
    %s59 = sphi 0, %s58
    %s73 = sphi 0, %s59
    %s81 = sphi 0, %s83
    %s84 = sphi 0, %s81
    %s85 = sphi 0, %s84
    %s101 = sphi 0, %s85
  $region4: #{_lambda_.1} parent=0 // loop_header_branch
    %11 = sbr.rel (%p9) target = $region8
  $region5: #{_lambda_.1} parent=0 // loop_body
    %s13 = ssub.s32 %s8, 1
    %s14 = ssub.s32 %s8, 2
    %s21 = sadd.s32 1, %s16
    %p22 = scmp.ge.s32.totalorder %s21, 1
    %s23 = scalar_select %p22, 0, %s21
    %s24 = sadd.s32 1, %s15
    %s25 = scalar_select %p22, %s24, %s15
    %p26 = scmp.ge.s32.totalorder %s25, 2
    %s27 = scalar_select %p26, 0, %s25
    %s28 = ssub.s32 %s15, %s27
    %s29 = ssub.s32 %s16, %s23
    %s30 = sor.u32 %s28, %s29
    %p31 = scmp.eq.s32.totalorder %s30, 0
    %s33 = sadd.s32 %s32, 1
    %s34 = scalar_select %p31, %s32, %s33
    %p37 = pneg %p31
    %p38 = scmp.eq.s32.totalorder %s8, 1
    %p39 = por %p37, %p38
    %p40 = scmp.ne.s32.totalorder %s32, %s35
    %p41 = scmp.eq.s32.totalorder %s8, 0
    %p42 = por %p40, %p41
    %p43 = scmp.ne.s32.totalorder %s32, %s35
    %p44 = scmp.eq.s32.totalorder %s13, 1
    %p45 = por %p43, %p44
    %p46 = scmp.ne.s32.totalorder %s35, %s36
    %p47 = scmp.eq.s32.totalorder %s13, 0
    %p48 = por %p46, %p47
    %p49 = scmp.ne.s32.totalorder %s35, %s36
    %p50 = scmp.eq.s32.totalorder %s14, 1
    %p51 = por %p49, %p50
    %p53 = scmp.ne.s32.totalorder %s36, %s52
    %p54 = scmp.eq.s32.totalorder %s14, 0
    %p55 = por %p53, %p54
    %s57 = sadd.s32 %s56, 1
    %p60 = scmp.eq.s32.totalorder %s8, 1
    %p61 = scmp.ne.s32.totalorder %s56, %s58
    %p62 = scmp.eq.s32.totalorder %s8, 0
    %p63 = por %p61, %p62
    %p64 = scmp.ne.s32.totalorder %s56, %s58
    %p65 = scmp.eq.s32.totalorder %s13, 1
    %p66 = por %p64, %p65
    %p67 = scmp.ne.s32.totalorder %s58, %s59
    %p68 = scmp.eq.s32.totalorder %s13, 0
    %p69 = por %p67, %p68
    %p70 = scmp.ne.s32.totalorder %s58, %s59
    %p71 = scmp.eq.s32.totalorder %s14, 1
    %p72 = por %p70, %p71
    %p74 = scmp.ne.s32.totalorder %s59, %s73
    %p75 = scmp.eq.s32.totalorder %s14, 0
    %p76 = por %p74, %p75
    %s77 = ssub.s32 %s15, %s27
    %s78 = ssub.s32 %s16, %s23
    %s79 = sor.u32 %s77, %s78
    %p80 = scmp.eq.s32.totalorder %s79, 0
    %s82 = sadd.s32 %s81, 1
    %s83 = scalar_select %p80, %s81, %s82
    %p86 = pneg %p80
    %p87 = scmp.eq.s32.totalorder %s8, 1
    %p88 = por %p86, %p87
    %p89 = scmp.ne.s32.totalorder %s81, %s84
    %p90 = scmp.eq.s32.totalorder %s8, 0
    %p91 = por %p89, %p90
    %p92 = scmp.ne.s32.totalorder %s81, %s84
    %p93 = scmp.eq.s32.totalorder %s13, 1
    %p94 = por %p92, %p93
    %p95 = scmp.ne.s32.totalorder %s84, %s85
    %p96 = scmp.eq.s32.totalorder %s13, 0
    %p97 = por %p95, %p96
    %p98 = scmp.ne.s32.totalorder %s84, %s85
    %p99 = scmp.eq.s32.totalorder %s14, 1
    %p100 = por %p98, %p99
    %p102 = scmp.ne.s32.totalorder %s85, %s101
    %p103 = scmp.eq.s32.totalorder %s14, 0
    %p104 = por %p102, %p103
    %p105 = scmp.le.s32.totalorder 1, %s8
    %p106 = scmp.lt.s32.totalorder %s8, 3
    %p107 = pnand %p105, %p106
    %p108 = pneg %p107
    // Predicated region
    $region9: #{_lambda_.1} parent=5 // pred_check
      _
    $region10: #{_lambda_.1} parent=5 // pred_check_branch
      %110 = sbr.rel (%p107) target = $region12
    $region11: #{_lambda_.1} parent=5 // pred_region
      %s111 = ssub.s32 %s8, 1
      // Predicated region
      $region13: #{_lambda_.1} parent=11 // pred_check
        %p112 = pneg %p69
      $region14: #{_lambda_.1} parent=11 // pred_check_branch
        %114 = sbr.rel (%p112) target = $region16
      $region15: #{_lambda_.1} parent=11 // pred_region
        _
      $region16: #{_lambda_.1} parent=11 // pred_fallthru
        _
    $region12: #{_lambda_.1} parent=5 // pred_fallthru
      _
    %p115 = scmp.lt.s32.totalorder %s8, 2
    // Predicated region
    $region17: #{_lambda_.1} parent=5 // pred_check
      %p116 = pneg %p115
    $region18: #{_lambda_.1} parent=5 // pred_check_branch
      %118 = sbr.rel (%p116) target = $region20
    $region19: #{_lambda_.1} parent=5 // pred_region
      // Predicated region
      $region21: #{_lambda_.1} parent=19 // pred_check
        %p119 = pneg %p42
      $region22: #{_lambda_.1} parent=19 // pred_check_branch
        %121 = sbr.rel (%p119) target = $region24
      $region23: #{_lambda_.1} parent=19 // pred_region
        %p122 = scmp.lt.s32.totalorder %s15, 1
        %s123 = scalar_select %p122, %s15, 1
        %p124 = scmp.lt.s32.totalorder %s16, 0
        %s125 = scalar_select %p124, %s16, 0
        %s126 = smul.addr %s123, 4
        %s127 = sadd.s32 %s125, %s126
        %s128 = smul.addr %s127, 2
        %s129 = scalar_lea.vmem %s0, %s128
      $region24: #{_lambda_.1} parent=19 // pred_fallthru
        _
    $region20: #{_lambda_.1} parent=5 // pred_fallthru
      _
    %p130 = scmp.le.s32.totalorder 1, %s8
    %p131 = scmp.lt.s32.totalorder %s8, 3
    %p132 = pnand %p130, %p131
    %p133 = pneg %p132
    // Predicated region
    $region25: #{_lambda_.1} parent=5 // pred_check
      _
    $region26: #{_lambda_.1} parent=5 // pred_check_branch
      %135 = sbr.rel (%p132) target = $region28
    $region27: #{_lambda_.1} parent=5 // pred_region
      %s136 = ssub.s32 %s8, 1
      %p137 = scmp.lt.s32.totalorder %s17, 1
      %s138 = scalar_select %p137, %s17, 1
      %p139 = scmp.lt.s32.totalorder %s18, 0
      %s140 = scalar_select %p139, %s18, 0
      %s141 = smul.addr %s138, 4
      %s142 = sadd.s32 %s140, %s141
      %s143 = smul.addr %s142, 2
      %s144 = scalar_lea.vmem %s0, %s143
      %p145 = pneg %p48
      %p146 = pneg %p45
      %p147 = pneg %p69
      %p148 = pneg %p66
      %p149 = pneg %p97
      %p150 = pneg %p94
      %p151 = scmp.lt.s32.totalorder %s17, 1
      %s152 = scalar_select %p151, %s17, 1
      %p153 = scmp.lt.s32.totalorder %s18, 0
      %s154 = scalar_select %p153, %s18, 0
      %s155 = smul.addr %s152, 2
      %s156 = sadd.s32 %s154, %s155
      %s157 = smul.addr %s156, 8
      %s158 = scalar_lea.vmem %s2, %s157
      %p159 = scmp.lt.s32.totalorder %s17, 1
      %s160 = scalar_select %p159, %s17, 1
      %p161 = scmp.lt.s32.totalorder %s18, 0
      %s162 = scalar_select %p161, %s18, 0
      %s163 = smul.addr %s160, 4
      %s164 = sadd.s32 %s162, %s163
      %s165 = smul.addr %s164, 2
      %s166 = scalar_lea.vmem %s0, %s165
      %p167 = scmp.lt.s32.totalorder %s17, 1
      %s168 = scalar_select %p167, %s17, 1
      %p169 = scmp.lt.s32.totalorder %s18, 0
      %s170 = scalar_select %p169, %s18, 0
      %s171 = smul.addr %s168, 2
      %s172 = sadd.s32 %s170, %s171
      %s173 = smul.addr %s172, 8
      %s174 = scalar_lea.vmem %s2, %s173
      %v176 = vld [vmem:[%s166] sm:$0x3]
      %v177 = vld [vmem:[%s1] sm:$0xf]
      %v178 = vld [vmem:[%s1 + $0x4] sm:$0xf]
      %v179 = vld [vmem:[%s1 + $0x8] sm:$0xf]
      %v180 = vld [vmem:[%s1 + $0xc] sm:$0xf]
      %v185 = vunpack.c.l.b16 %v177
      %v186 = vunpack.c.l.b16 %v178
      %v187 = vunpack.c.l.b16 %v179
      %v188 = vunpack.c.l.b16 %v180
      %v189 = vpack.c.b16 %v186, %v185
      %v190 = vpack.c.b16 %v188, %v187
      %vm191 = vcmask 31744
      %v193 = vsel %vm191, %v189, 0
      %v196 = vsel %vm191, %v190, 0
      %vm198 = vcmask 1041408
      %v200 = vsel %vm198, %v176, 0
      %202 = vmatpush.bf16.msra.mxu0 0
      %203 = vmatpush.bf16.msra.mxu0 0
      %204 = vmatpush.bf16.msra.mxu0 0
      %205 = vmatpush.bf16.msra.mxu0 0
      %206 = vmatpush.bf16.msra.mxu0 0
      %207 = vmatpush.bf16.msra.mxu0 0
      %208 = vmatpush.bf16.msra.mxu0 0
      %209 = vmatpush.bf16.msra.mxu0 %v200
      %210 = vmatmul.bf16.gmra.mxu0 %v193
      %v211 = vpop.f32.mrf.mxu0
      %v212 = vadd.f32 0.0, %v211
      %v213 = vpop.f32.mrf.mxu0
      %v214 = vadd.f32 0.0, %v213
      %215 = vmatmul.bf16.gmra.mxu0 %v196
      %v216 = vpop.f32.mrf.mxu0
      %v217 = vadd.f32 0.0, %v216
      %v218 = vpop.f32.mrf.mxu0
      %v219 = vadd.f32 0.0, %v218
      %220 = vdwg.mxu0
      %221 = vst [vmem:[#allocation2] sm:$0xff] %v212
      %222 = vst [vmem:[#allocation2 + $0x8] sm:$0xff] %v214
      %223 = vst [vmem:[#allocation2 + $0x10] sm:$0xff] %v217
      %224 = vst [vmem:[#allocation2 + $0x18] sm:$0xff] %v219
      %s225 = scalar_lea.vmem %s166, 2
      %v226 = vld [vmem:[%s225] sm:$0x3]
      %s227 = scalar_lea.vmem %s1, 16
      %v228 = vld [vmem:[%s227] sm:$0xf]
      %v229 = vld [vmem:[%s227 + $0x4] sm:$0xf]
      %v230 = vld [vmem:[%s227 + $0x8] sm:$0xf]
      %v231 = vld [vmem:[%s227 + $0xc] sm:$0xf]
      %v236 = vunpack.c.l.b16 %v228
      %v237 = vunpack.c.l.b16 %v229
      %v238 = vunpack.c.l.b16 %v230
      %v239 = vunpack.c.l.b16 %v231
      %v240 = vpack.c.b16 %v237, %v236
      %v241 = vpack.c.b16 %v239, %v238
      %v243 = vsel %vm191, %v240, 0
      %v246 = vsel %vm191, %v241, 0
      %v249 = vsel %vm198, %v226, 0
      %251 = vmatpush.bf16.msra.mxu0 0
      %252 = vmatpush.bf16.msra.mxu0 0
      %253 = vmatpush.bf16.msra.mxu0 0
      %254 = vmatpush.bf16.msra.mxu0 0
      %255 = vmatpush.bf16.msra.mxu0 0
      %256 = vmatpush.bf16.msra.mxu0 0
      %257 = vmatpush.bf16.msra.mxu0 0
      %258 = vmatpush.bf16.msra.mxu0 %v249
      %259 = vmatmul.bf16.gmra.mxu0 %v243
      %v260 = vpop.f32.mrf.mxu0
      %v261 = vadd.f32 0.0, %v260
      %v262 = vpop.f32.mrf.mxu0
      %v263 = vadd.f32 0.0, %v262
      %264 = vmatmul.bf16.gmra.mxu0 %v246
      %v265 = vpop.f32.mrf.mxu0
      %v266 = vadd.f32 0.0, %v265
      %v267 = vpop.f32.mrf.mxu0
      %v268 = vadd.f32 0.0, %v267
      %269 = vdwg.mxu0
      %v270 = vld [vmem:[#allocation2] sm:$0xff]
      %v271 = vld [vmem:[#allocation2 + $0x8] sm:$0xff]
      %v272 = vld [vmem:[#allocation2 + $0x10] sm:$0xff]
      %v273 = vld [vmem:[#allocation2 + $0x18] sm:$0xff]
      %v274 = vadd.f32 %v270, %v261
      %v275 = vadd.f32 %v271, %v263
      %v276 = vadd.f32 %v272, %v266
      %v277 = vadd.f32 %v273, %v268
      %278 = vst [vmem:[#allocation2] sm:$0xff] %v274
      %279 = vst [vmem:[#allocation2 + $0x8] sm:$0xff] %v275
      %280 = vst [vmem:[#allocation2 + $0x10] sm:$0xff] %v276
      %281 = vst [vmem:[#allocation2 + $0x18] sm:$0xff] %v277
      %s282 = scalar_lea.vmem %s166, 4
      %v283 = vld [vmem:[%s282] sm:$0x3]
      %s284 = scalar_lea.vmem %s1, 32
      %v285 = vld [vmem:[%s284] sm:$0xf]
      %v286 = vld [vmem:[%s284 + $0x4] sm:$0xf]
      %v287 = vld [vmem:[%s284 + $0x8] sm:$0xf]
      %v288 = vld [vmem:[%s284 + $0xc] sm:$0xf]
      %v293 = vunpack.c.l.b16 %v285
      %v294 = vunpack.c.l.b16 %v286
      %v295 = vunpack.c.l.b16 %v287
      %v296 = vunpack.c.l.b16 %v288
      %v297 = vpack.c.b16 %v294, %v293
      %v298 = vpack.c.b16 %v296, %v295
      %v300 = vsel %vm191, %v297, 0
      %v303 = vsel %vm191, %v298, 0
      %v306 = vsel %vm198, %v283, 0
      %308 = vmatpush.bf16.msra.mxu0 0
      %309 = vmatpush.bf16.msra.mxu0 0
      %310 = vmatpush.bf16.msra.mxu0 0
      %311 = vmatpush.bf16.msra.mxu0 0
      %312 = vmatpush.bf16.msra.mxu0 0
      %313 = vmatpush.bf16.msra.mxu0 0
      %314 = vmatpush.bf16.msra.mxu0 0
      %315 = vmatpush.bf16.msra.mxu0 %v306
      %316 = vmatmul.bf16.gmra.mxu0 %v300
      %v317 = vpop.f32.mrf.mxu0
      %v318 = vadd.f32 0.0, %v317
      %v319 = vpop.f32.mrf.mxu0
      %v320 = vadd.f32 0.0, %v319
      %321 = vmatmul.bf16.gmra.mxu0 %v303
      %v322 = vpop.f32.mrf.mxu0
      %v323 = vadd.f32 0.0, %v322
      %v324 = vpop.f32.mrf.mxu0
      %v325 = vadd.f32 0.0, %v324
      %326 = vdwg.mxu0
      %v327 = vld [vmem:[#allocation2] sm:$0xff]
      %v328 = vld [vmem:[#allocation2 + $0x8] sm:$0xff]
      %v329 = vld [vmem:[#allocation2 + $0x10] sm:$0xff]
      %v330 = vld [vmem:[#allocation2 + $0x18] sm:$0xff]
      %v331 = vadd.f32 %v327, %v318
      %v332 = vadd.f32 %v328, %v320
      %v333 = vadd.f32 %v329, %v323
      %v334 = vadd.f32 %v330, %v325
      %335 = vst [vmem:[#allocation2] sm:$0xff] %v331
      %336 = vst [vmem:[#allocation2 + $0x8] sm:$0xff] %v332
      %337 = vst [vmem:[#allocation2 + $0x10] sm:$0xff] %v333
      %338 = vst [vmem:[#allocation2 + $0x18] sm:$0xff] %v334
      %s339 = scalar_lea.vmem %s166, 6
      %v340 = vld [vmem:[%s339] sm:$0x3]
      %s341 = scalar_lea.vmem %s1, 48
      %v342 = vld [vmem:[%s341] sm:$0xf]
      %v343 = vld [vmem:[%s341 + $0x4] sm:$0xf]
      %v344 = vld [vmem:[%s341 + $0x8] sm:$0xf]
      %v345 = vld [vmem:[%s341 + $0xc] sm:$0xf]
      %v350 = vunpack.c.l.b16 %v342
      %v351 = vunpack.c.l.b16 %v343
      %v352 = vunpack.c.l.b16 %v344
      %v353 = vunpack.c.l.b16 %v345
      %v354 = vpack.c.b16 %v351, %v350
      %v355 = vpack.c.b16 %v353, %v352
      %v357 = vsel %vm191, %v354, 0
      %v360 = vsel %vm191, %v355, 0
      %v363 = vsel %vm198, %v340, 0
      %365 = vmatpush.bf16.msra.mxu0 0
      %366 = vmatpush.bf16.msra.mxu0 0
      %367 = vmatpush.bf16.msra.mxu0 0
      %368 = vmatpush.bf16.msra.mxu0 0
      %369 = vmatpush.bf16.msra.mxu0 0
      %370 = vmatpush.bf16.msra.mxu0 0
      %371 = vmatpush.bf16.msra.mxu0 0
      %372 = vmatpush.bf16.msra.mxu0 %v363
      %373 = vmatmul.bf16.gmra.mxu0 %v357
      %v374 = vpop.f32.mrf.mxu0
      %v375 = vadd.f32 0.0, %v374
      %v376 = vpop.f32.mrf.mxu0
      %v377 = vadd.f32 0.0, %v376
      %378 = vmatmul.bf16.gmra.mxu0 %v360
      %v379 = vpop.f32.mrf.mxu0
      %v380 = vadd.f32 0.0, %v379
      %v381 = vpop.f32.mrf.mxu0
      %v382 = vadd.f32 0.0, %v381
      %383 = vdwg.mxu0
      %v384 = vld [vmem:[#allocation2] sm:$0xff]
      %v385 = vld [vmem:[#allocation2 + $0x8] sm:$0xff]
      %v386 = vld [vmem:[#allocation2 + $0x10] sm:$0xff]
      %v387 = vld [vmem:[#allocation2 + $0x18] sm:$0xff]
      %v388 = vadd.f32 %v384, %v375
      %v389 = vadd.f32 %v385, %v377
      %v390 = vadd.f32 %v386, %v380
      %v391 = vadd.f32 %v387, %v382
      %392 = vst [vmem:[#allocation2] sm:$0xff] %v388
      %393 = vst [vmem:[#allocation2 + $0x8] sm:$0xff] %v389
      %394 = vst [vmem:[#allocation2 + $0x10] sm:$0xff] %v390
      %395 = vst [vmem:[#allocation2 + $0x18] sm:$0xff] %v391
      %v396 = vld [vmem:[#allocation2] sm:$0xff]
      %v397 = vld [vmem:[#allocation2 + $0x8] sm:$0xff]
      %v398 = vld [vmem:[#allocation2 + $0x10] sm:$0xff]
      %v399 = vld [vmem:[#allocation2 + $0x18] sm:$0xff]
      %v400 = vmul.f32 %v396, %v396
      %v401 = vmul.f32 %v397, %v397
      %v402 = vmul.f32 %v398, %v398
      %v403 = vmul.f32 %v399, %v399
      %v404 = vadd.f32 %v400, %v402
      %v405 = vadd.f32 %v401, %v403
      %v406 = vrsqrt.pop %v404
      %v407 = vmul.f32 %v406, %v404
      %v408 = vmul.f32 %v407, %v406
      %v409 = vmul.f32 0.5, %v408
      %v410 = vsub.f32 1.5, %v409
      %v411 = vmul.f32 %v406, %v410
      %v412 = vmul.f32 %v404, %v411
      %vm413 = vcmp.eq.f32.partialorder %v404, inf
      %v414 = vsel %vm413, %v404, %v412
      %vm415 = vcmp.eq.f32.partialorder %v404, 0.0
      %v416 = vand.u32 %v404, 2147483648
      %v417 = vsel %vm415, %v416, %v414
      %v418 = vrsqrt.pop %v405
      %v419 = vmul.f32 %v418, %v405
      %v420 = vmul.f32 %v419, %v418
      %v421 = vmul.f32 0.5, %v420
      %v422 = vsub.f32 1.5, %v421
      %v423 = vmul.f32 %v418, %v422
      %v424 = vmul.f32 %v405, %v423
      %vm425 = vcmp.eq.f32.partialorder %v405, inf
      %v426 = vsel %vm425, %v405, %v424
      %vm427 = vcmp.eq.f32.partialorder %v405, 0.0
      %v428 = vand.u32 %v405, 2147483648
      %v429 = vsel %vm427, %v428, %v426
      %430 = vst [vmem:[%s174] sm:$0xff] %v417
      %431 = vst [vmem:[%s174 + $0x8] sm:$0xff] %v429
      %p432 = scmp.lt.s32.totalorder %s17, 1
      %s433 = scalar_select %p432, %s17, 1
      %p434 = scmp.lt.s32.totalorder %s18, 0
      %s435 = scalar_select %p434, %s18, 0
      %s436 = smul.addr %s433, 2
      %s437 = sadd.s32 %s435, %s436
      %s438 = smul.addr %s437, 8
      %s439 = scalar_lea.vmem %s2, %s438
      // Predicated region
      $region29: #{_lambda_.1} parent=27 // pred_check
        %p440 = pneg %p94
      $region30: #{_lambda_.1} parent=27 // pred_check_branch
        %442 = sbr.rel (%p440) target = $region32
      $region31: #{_lambda_.1} parent=27 // pred_region
        _
      $region32: #{_lambda_.1} parent=27 // pred_fallthru
        _
    $region28: #{_lambda_.1} parent=5 // pred_fallthru
      _
    %p443 = scmp.le.s32.totalorder 2, %s8
    // Predicated region
    $region33: #{_lambda_.1} parent=5 // pred_check
      %p444 = pneg %p443
    $region34: #{_lambda_.1} parent=5 // pred_check_branch
      %446 = sbr.rel (%p444) target = $region36
    $region35: #{_lambda_.1} parent=5 // pred_region
      %s447 = ssub.s32 %s8, 2
      // Predicated region
      $region37: #{_lambda_.1} parent=35 // pred_check
        %p448 = pneg %p100
      $region38: #{_lambda_.1} parent=35 // pred_check_branch
        %450 = sbr.rel (%p448) target = $region40
      $region39: #{_lambda_.1} parent=35 // pred_region
        %p451 = scmp.lt.s32.totalorder %s19, 1
        %s452 = scalar_select %p451, %s19, 1
        %p453 = scmp.lt.s32.totalorder %s20, 0
        %s454 = scalar_select %p453, %s20, 0
        %s455 = smul.addr %s452, 2
        %s456 = sadd.s32 %s454, %s455
        %s457 = smul.addr %s456, 8
        %s458 = scalar_lea.vmem %s2, %s457
      $region40: #{_lambda_.1} parent=35 // pred_fallthru
        _
    $region36: #{_lambda_.1} parent=5 // pred_fallthru
      _
  $region6: #{_lambda_.1} parent=0 // loop_footer
    %s12 = sadd.s32 1, %s8
  $region7: #{_lambda_.1} parent=0 // loop_footer_branch
    %7 = sbr.rel target = $region3
  $region8: #{_lambda_.1} parent=0 // loop_exit
    _

</llo_original>
